<compile_context>
chip_gen: v5e
topology: v5e:2x2
jax: 0.10.0
libtpu: 0.0.40
codegen_flags: <defaults>
</compile_context>

<pallas_src>
import jax
import jax.numpy as jnp
from jax.experimental import pallas as pl
from jax.experimental.pallas import tpu as pltpu


def _make_kernel(toh, ow, k4):
    """Kernel for one (batch image, row-tile) grid step."""

    def kernel(qm_ref, qh_ref, wg_ref, shift_ref, o_ref):
        # qm_ref:    (1, toh, ow+1, k4)  space-to-depth rows [i*toh, i*toh+toh)
        # qh_ref:    (1, 1,   ow+1, k4)  halo row  i*toh + toh
        # wg_ref:    (4, k4, cp)         BN-scaled weight slab per (dr, dc) offset
        # shift_ref: (1, cp)             folded BatchNorm shift (f32)
        # o_ref:     (1, toh, ow, cp)
        q_full = jnp.concatenate([qm_ref[0], qh_ref[0]], axis=0)  # (toh+1, ow+1, k4)

        acc = None
        for dr in (0, 1):                      # 2x2 stride-1 conv over Q == the
            for dc in (0, 1):                  # original 3x3 stride-2 conv over x
                v = q_full[dr:dr + toh, dc:dc + ow, :].reshape(-1, k4)
                p = jnp.dot(v, wg_ref[2 * dr + dc],
                            preferred_element_type=jnp.float32)
                acc = p if acc is None else acc + p

        y = acc + shift_ref[...]               # BatchNorm (scale folded into wg)
        y = y * jax.nn.sigmoid(y)              # Swish / SiLU
        o_ref[...] = y.reshape(o_ref.shape).astype(o_ref.dtype)

    return kernel


def downsample_forward(x, weight, gamma, beta, running_mean, running_var,
                       *, stride=2, eps=1e-5, tile_rows=None):
    """Forward of `downsample`: Conv2d(3x3, stride=2, pad=1) -> BatchNorm2d
    (inference statistics) -> Swish.  x is NCHW."""
    N, Cin, H, W = x.shape
    Cout = weight.shape[0]
    if stride != 2:
        raise NotImplementedError("fused Pallas path is specialized to stride=2")
    pad = (4 - stride) // 2                       # = 1
    OH = (H + 2 * pad - 3) // stride + 1
    OW = (W + 2 * pad - 3) // stride + 1
    OWp = OW + 1
    K4 = 4 * Cin
    Cp = ((Cout + 127) // 128) * 128              # lane-dense output channels
    Cp = max(Cp, 128)
    cdtype = x.dtype                              # keep model dtype on the MXU
    isz = x.dtype.itemsize

    # ---- space-to-depth input (one HBM copy; replaces the im2col buffer) ----
    x_nhwc = jnp.transpose(x, (0, 2, 3, 1))                       # (N, H, W, Cin)
    Hq, Wq = 2 * OH + 2, 2 * OW + 2
    x_pad = jnp.pad(x_nhwc, ((0, 0), (pad, Hq - H - pad),
                             (pad, Wq - W - pad), (0, 0)))
    q = x_pad.reshape(N, OH + 1, 2, OWp, 2, Cin)
    q = q.transpose(0, 1, 3, 2, 4, 5).reshape(N, OH + 1, OWp, K4).astype(cdtype)

    # ---- fold BN scale into weights; build one (K4, Cp) slab per (dr, dc) ---
    scale = (gamma.astype(jnp.float32) /
             jnp.sqrt(running_var.astype(jnp.float32) + eps))
    shift = beta.astype(jnp.float32) - running_mean.astype(jnp.float32) * scale
    w_scaled = weight.astype(jnp.float32) * scale[:, None, None, None]  # (Cout,Cin,3,3)

    wg = jnp.zeros((2, 2, 2, 2, Cin, Cp), jnp.float32)   # [dr, dc, pr, pc, cin, cout]
    for kh in range(3):
        for kw in range(3):
            dr, pr = divmod(kh, 2)
            dc, pc = divmod(kw, 2)
            wg = wg.at[dr, dc, pr, pc, :, :Cout].set(w_scaled[:, :, kh, kw].T)
    wg = wg.reshape(4, K4, Cp).astype(cdtype)            # slab index = 2*dr + dc
    shift2 = jnp.pad(shift.reshape(1, Cout), ((0, 0), (0, Cp - Cout)))  # f32

    # ---- row tiling: aim for >= ~8 grid steps, VMEM-bounded blocks ----------
    q_row_bytes = OWp * K4 * isz
    o_row_bytes = OW * Cp * isz
    budget = 2 * 1024 * 1024                 # per block (Pallas double-buffers them)
    cap = max(1, min(budget // q_row_bytes, budget // o_row_bytes))
    if tile_rows is None:
        tiles_target = max(1, pl.cdiv(8, N))
        tile_rows = max(1, pl.cdiv(OH, tiles_target))
    toh = int(min(tile_rows, cap, OH))
    n_tiles = pl.cdiv(OH, toh)
    OH_pad = n_tiles * toh
    if OH_pad > OH:                          # pad rows so tiles divide evenly;
        q = jnp.pad(q, ((0, 0), (0, OH_pad - OH), (0, 0), (0, 0)))

    # ---- cost hint for the XLA scheduler ------------------------------------
    cost = pl.CostEstimate(
        flops=2 * N * OH * OW * (9 * Cin) * Cout,
        transcendentals=N * OH_pad * OW * Cp,
        bytes_accessed=int(q.size * isz + wg.size * isz + shift2.size * 4
                           + N * OH_pad * OW * Cp * isz),
    )

    kernel = _make_kernel(toh, OW, K4)
    out = pl.pallas_call(
        kernel,
        out_shape=jax.ShapeDtypeStruct((N, OH_pad, OW, Cp), cdtype),
        grid_spec=pltpu.PrefetchScalarGridSpec(
            num_scalar_prefetch=0,
            grid=(N, n_tiles),
            in_specs=[
                # main row-tile of Q
                pl.BlockSpec((1, toh, OWp, K4), lambda n, i: (n, i, 0, 0)),
                # one-row halo (same array, 1-row blocks => element-granular row)
                pl.BlockSpec((1, 1, OWp, K4), lambda n, i: (n, (i + 1) * toh, 0, 0)),
                # resident BN-scaled weight slabs + shift
                pl.BlockSpec((4, K4, Cp), lambda n, i: (0, 0, 0)),
                pl.BlockSpec((1, Cp), lambda n, i: (0, 0)),
            ],
            out_specs=pl.BlockSpec((1, toh, OW, Cp), lambda n, i: (n, i, 0, 0)),
        ),
        compiler_params=pltpu.CompilerParams(
            dimension_semantics=("parallel", "parallel"),
            vmem_limit_bytes=64 * 1024 * 1024,
        ),
        cost_estimate=cost,
    )(q, q, wg, shift2)

    # strip row / channel padding, back to NCHW
    return jnp.transpose(out[:, :OH, :, :Cout], (0, 3, 1, 2))


if __name__ == "__main__":
    key = jax.random.PRNGKey(0)
    k_x, k_w, k_g, k_b, k_m, k_v = jax.random.split(key, 6)

    N, Cin, H, W = 2, 4, 16, 16
    Cout, stride = 8, 2

    x = jax.random.normal(k_x, (N, Cin, H, W), dtype=jnp.float32)
    weight = 0.1 * jax.random.normal(k_w, (Cout, Cin, 3, 3), dtype=jnp.float32)
    gamma = 1.0 + 0.1 * jax.random.normal(k_g, (Cout,), dtype=jnp.float32)
    beta = 0.1 * jax.random.normal(k_b, (Cout,), dtype=jnp.float32)
    running_mean = 0.1 * jax.random.normal(k_m, (Cout,), dtype=jnp.float32)
    running_var = jax.random.uniform(k_v, (Cout,), dtype=jnp.float32,
                                     minval=0.5, maxval=1.5)

    y = downsample_forward(x, weight, gamma, beta, running_mean, running_var,
                           stride=stride)
    jax.block_until_ready(y)

    # Pure-JAX reference (same inference-mode BatchNorm semantics).
    conv = jax.lax.conv_general_dilated(
        x, weight, window_strides=(stride, stride),
        padding=((1, 1), (1, 1)),
        dimension_numbers=("NCHW", "OIHW", "NCHW"))
    bn = (conv - running_mean[None, :, None, None]) / jnp.sqrt(
        running_var[None, :, None, None] + 1e-5)
    bn = bn * gamma[None, :, None, None] + beta[None, :, None, None]
    ref = bn * jax.nn.sigmoid(bn)

    assert y.shape == (N, Cout, H // stride, W // stride), y.shape
    assert y.dtype == x.dtype
    err = float(jnp.max(jnp.abs(y - ref)))
    assert err < 1e-2, err
    print("KERNEL_OK")
</pallas_src>

<mosaic_0001>
module attributes {stable_mosaic.version = 11 : i64} {
  func.func @kernel(%arg0: i32, %arg1: i32, %arg2: memref<1x2x9x16xf32, #tpu.memory_space<vmem>>, %arg3: memref<1x1x9x16xf32, #tpu.memory_space<vmem>>, %arg4: memref<4x16x128xf32, #tpu.memory_space<vmem>>, %arg5: memref<1x128xf32, #tpu.memory_space<vmem>>, %arg6: memref<1x2x8x128xf32, #tpu.memory_space<vmem>>) attributes {dimension_semantics = [#tpu.dimension_semantics<parallel>, #tpu.dimension_semantics<parallel>], iteration_bounds = array<i64: 2, 4>, scalar_prefetch = 0 : i64, scratch_operands = 0 : i64, tpu.core_type = #tpu.core_type<tc>, window_params = [{transform_indices = @transform_0, window_bounds = array<i64: 1, 2, 9, 16>}, {transform_indices = @transform_1, window_bounds = array<i64: 1, 1, 9, 16>}, {pipeline_mode = #tpu.pipeline_mode<synchronous>, transform_indices = @transform_2, window_bounds = array<i64: 4, 16, 128>}, {pipeline_mode = #tpu.pipeline_mode<synchronous>, transform_indices = @transform_3, window_bounds = array<i64: 1, 128>}, {transform_indices = @transform_4, window_bounds = array<i64: 1, 2, 8, 128>}]} {
    %c0 = arith.constant 0 : index
    %c0_0 = arith.constant 0 : index
    %c0_1 = arith.constant 0 : index
    %c0_2 = arith.constant 0 : index
    %0 = vector.load %arg2[%c0, %c0_0, %c0_1, %c0_2] : memref<1x2x9x16xf32, #tpu.memory_space<vmem>>, vector<1x2x9x16xf32>
    %1 = vector.shape_cast %0 : vector<1x2x9x16xf32> to vector<2x9x16xf32>
    %c0_3 = arith.constant 0 : index
    %c0_4 = arith.constant 0 : index
    %c0_5 = arith.constant 0 : index
    %c0_6 = arith.constant 0 : index
    %2 = vector.load %arg3[%c0_3, %c0_4, %c0_5, %c0_6] : memref<1x1x9x16xf32, #tpu.memory_space<vmem>>, vector<1x1x9x16xf32>
    %3 = vector.shape_cast %2 : vector<1x1x9x16xf32> to vector<1x9x16xf32>
    %4 = tpu.concatenate %1, %3 in 0 : vector<2x9x16xf32>, vector<1x9x16xf32> -> vector<3x9x16xf32>
    %5 = vector.extract_strided_slice %4 {offsets = [0, 0, 0], sizes = [2, 8, 16], strides = [1, 1, 1]} : vector<3x9x16xf32> to vector<2x8x16xf32>
    %6 = vector.shape_cast %5 : vector<2x8x16xf32> to vector<16x16xf32>
    %c0_7 = arith.constant 0 : index
    %c0_8 = arith.constant 0 : index
    %c0_9 = arith.constant 0 : index
    %7 = vector.load %arg4[%c0_7, %c0_8, %c0_9] : memref<4x16x128xf32, #tpu.memory_space<vmem>>, vector<1x16x128xf32>
    %8 = vector.shape_cast %7 : vector<1x16x128xf32> to vector<16x128xf32>
    %cst = arith.constant dense<0.000000e+00> : vector<16x128xf32>
    %9 = tpu.matmul %6, %8, %cst {dimension_numbers = #tpu.dot_dimension_numbers<[1], [0], [0], [1], [0, 0, 1, 1], [], []>} : vector<16x16xf32>, vector<16x128xf32>, vector<16x128xf32> -> vector<16x128xf32>
    %10 = vector.extract_strided_slice %4 {offsets = [0, 1, 0], sizes = [2, 8, 16], strides = [1, 1, 1]} : vector<3x9x16xf32> to vector<2x8x16xf32>
    %11 = vector.shape_cast %10 : vector<2x8x16xf32> to vector<16x16xf32>
    %c1 = arith.constant 1 : index
    %c0_10 = arith.constant 0 : index
    %c0_11 = arith.constant 0 : index
    %12 = vector.load %arg4[%c1, %c0_10, %c0_11] : memref<4x16x128xf32, #tpu.memory_space<vmem>>, vector<1x16x128xf32>
    %13 = vector.shape_cast %12 : vector<1x16x128xf32> to vector<16x128xf32>
    %cst_12 = arith.constant dense<0.000000e+00> : vector<16x128xf32>
    %14 = tpu.matmul %11, %13, %cst_12 {dimension_numbers = #tpu.dot_dimension_numbers<[1], [0], [0], [1], [0, 0, 1, 1], [], []>} : vector<16x16xf32>, vector<16x128xf32>, vector<16x128xf32> -> vector<16x128xf32>
    %15 = arith.addf %9, %14 : vector<16x128xf32>
    %16 = vector.extract_strided_slice %4 {offsets = [1, 0, 0], sizes = [2, 8, 16], strides = [1, 1, 1]} : vector<3x9x16xf32> to vector<2x8x16xf32>
    %17 = vector.shape_cast %16 : vector<2x8x16xf32> to vector<16x16xf32>
    %c2 = arith.constant 2 : index
    %c0_13 = arith.constant 0 : index
    %c0_14 = arith.constant 0 : index
    %18 = vector.load %arg4[%c2, %c0_13, %c0_14] : memref<4x16x128xf32, #tpu.memory_space<vmem>>, vector<1x16x128xf32>
    %19 = vector.shape_cast %18 : vector<1x16x128xf32> to vector<16x128xf32>
    %cst_15 = arith.constant dense<0.000000e+00> : vector<16x128xf32>
    %20 = tpu.matmul %17, %19, %cst_15 {dimension_numbers = #tpu.dot_dimension_numbers<[1], [0], [0], [1], [0, 0, 1, 1], [], []>} : vector<16x16xf32>, vector<16x128xf32>, vector<16x128xf32> -> vector<16x128xf32>
    %21 = arith.addf %15, %20 : vector<16x128xf32>
    %22 = vector.extract_strided_slice %4 {offsets = [1, 1, 0], sizes = [2, 8, 16], strides = [1, 1, 1]} : vector<3x9x16xf32> to vector<2x8x16xf32>
    %23 = vector.shape_cast %22 : vector<2x8x16xf32> to vector<16x16xf32>
    %c3 = arith.constant 3 : index
    %c0_16 = arith.constant 0 : index
    %c0_17 = arith.constant 0 : index
    %24 = vector.load %arg4[%c3, %c0_16, %c0_17] : memref<4x16x128xf32, #tpu.memory_space<vmem>>, vector<1x16x128xf32>
    %25 = vector.shape_cast %24 : vector<1x16x128xf32> to vector<16x128xf32>
    %cst_18 = arith.constant dense<0.000000e+00> : vector<16x128xf32>
    %26 = tpu.matmul %23, %25, %cst_18 {dimension_numbers = #tpu.dot_dimension_numbers<[1], [0], [0], [1], [0, 0, 1, 1], [], []>} : vector<16x16xf32>, vector<16x128xf32>, vector<16x128xf32> -> vector<16x128xf32>
    %27 = arith.addf %21, %26 : vector<16x128xf32>
    %c0_19 = arith.constant 0 : index
    %c0_20 = arith.constant 0 : index
    %28 = vector.load %arg5[%c0_19, %c0_20] : memref<1x128xf32, #tpu.memory_space<vmem>>, vector<1x128xf32>
    %29 = vector.broadcast %28 : vector<1x128xf32> to vector<16x128xf32>
    %30 = arith.addf %27, %29 : vector<16x128xf32>
    %31 = arith.negf %30 : vector<16x128xf32>
    %32 = math.exp %31 : vector<16x128xf32>
    %cst_21 = arith.constant 1.000000e+00 : f32
    %33 = vector.broadcast %cst_21 : f32 to vector<16x128xf32>
    %34 = arith.addf %33, %32 : vector<16x128xf32>
    %35 = arith.divf %33, %34 : vector<16x128xf32>
    %36 = arith.mulf %30, %35 : vector<16x128xf32>
    %37 = vector.shape_cast %36 : vector<16x128xf32> to vector<1x2x8x128xf32>
    %c0_22 = arith.constant 0 : index
    %c0_23 = arith.constant 0 : index
    %c0_24 = arith.constant 0 : index
    %c0_25 = arith.constant 0 : index
    %38 = vector.load %arg6[%c0_22, %c0_23, %c0_24, %c0_25] : memref<1x2x8x128xf32, #tpu.memory_space<vmem>>, vector<1x2x8x128xf32>
    tpu.vector_store %arg6[%c0_22, %c0_23, %c0_24, %c0_25], %37 {strides = array<i32>} : memref<1x2x8x128xf32, #tpu.memory_space<vmem>>, vector<1x2x8x128xf32>,
    return
  }
  func.func @transform_0(%arg0: i32, %arg1: i32) -> (i32, i32, i32, i32) {
    %c0_i32 = arith.constant 0 : i32
    %c0_i32_0 = arith.constant 0 : i32
    %c0_i32_1 = arith.constant 0 : i32
    return %arg0, %arg1, %c0_i32, %c0_i32_0 : i32, i32, i32, i32
  }
  func.func @transform_1(%arg0: i32, %arg1: i32) -> (i32, i32, i32, i32) {
    %c1_i32 = arith.constant 1 : i32
    %0 = arith.addi %arg1, %c1_i32 : i32
    %c2_i32 = arith.constant 2 : i32
    %1 = arith.muli %0, %c2_i32 : i32
    %c0_i32 = arith.constant 0 : i32
    %c0_i32_0 = arith.constant 0 : i32
    %c0_i32_1 = arith.constant 0 : i32
    return %arg0, %1, %c0_i32, %c0_i32_0 : i32, i32, i32, i32
  }
  func.func @transform_2(%arg0: i32, %arg1: i32) -> (i32, i32, i32) {
    %c0_i32 = arith.constant 0 : i32
    %c0_i32_0 = arith.constant 0 : i32
    %c0_i32_1 = arith.constant 0 : i32
    %c0_i32_2 = arith.constant 0 : i32
    return %c0_i32, %c0_i32_0, %c0_i32_1 : i32, i32, i32
  }
  func.func @transform_3(%arg0: i32, %arg1: i32) -> (i32, i32) {
    %c0_i32 = arith.constant 0 : i32
    %c0_i32_0 = arith.constant 0 : i32
    %c0_i32_1 = arith.constant 0 : i32
    return %c0_i32, %c0_i32_0 : i32, i32
  }
  func.func @transform_4(%arg0: i32, %arg1: i32) -> (i32, i32, i32, i32) {
    %c0_i32 = arith.constant 0 : i32
    %c0_i32_0 = arith.constant 0 : i32
    %c0_i32_1 = arith.constant 0 : i32
    return %arg0, %arg1, %c0_i32, %c0_i32_0 : i32, i32, i32, i32
  }
}

</mosaic_0001>

<llo_original>
// kernel: tpu_custom_call.1
$region0: #{tpu_custom_call.1}
  #allocation0 [shape = 'u32[]', space=smem, size = 0x4, offset = 0x4, fixed_abs, tag = 'smem constant byte address 0x4 - core index']
  #allocation1 [shape = 'u32[72,128]{1,0:T(1,128)}', space=vmem, size = 0x9000, scoped, tag = 'internal scratch']
  %s0 = inlined_call_operand.vmem [shape: f32[2,9,9,16], index: 0, kind: input, shape index: {}]
  %s1 = inlined_call_operand.vmem [shape: f32[2,9,9,16], index: 1, kind: input, shape index: {}]
  %s2 = inlined_call_operand.vmem [shape: f32[4,16,128], index: 2, kind: input, shape index: {}]
  %s3 = inlined_call_operand.vmem [shape: f32[1,128], index: 3, kind: input, shape index: {}]
  %s4 = inlined_call_operand.hbm [shape: f32[2,8,8,128], index: 4, kind: output, shape index: {}]
  %s5 = sld [smem:[#allocation0]]
  $region49: #{tpu_custom_call.1} parent=0
    _
  %s7 = ssub.s32 1, %s5
  %s8 = scalar_select 0, %s7, %s5
  $region1: #{tpu_custom_call.1} parent=0
    #allocation2 [shape = 'u8[16384]{0}', space=vmem, size = 0x4000, scoped, tag = 'output window, operand 0']
    #allocation3 [shape = 's32[2]{0}', space=sflag, size = 0x8, scoped, tag = 'scoped memory for tpu_custom_call.1']
    %9 = vsyncpa [#allocation3], 0
    %s10 = scalar_lea.sflag [#allocation3], 1
    %11 = vsyncpa %s10, 0
    loop: start=0, step=1, limit=10
    $region2: #{tpu_custom_call.1} parent=1 // loop_pre_header
      _
    $region3: #{tpu_custom_call.1} parent=1 // loop_header
      %s13 = sphi 0, %s17
      %p14 = scmp.ge.s32.totalorder %s13, 10
      %s20 = sphi 0, %s32
      %s21 = sphi 0, %s28
      %s22 = sphi 0, %s20
      %s23 = sphi 0, %s21
      %s24 = sphi 0, %s22
      %s25 = sphi 0, %s23
      %s37 = sphi 0, %s39
      %s40 = sphi 0, %s37
      %s41 = sphi 0, %s40
      %s57 = sphi 0, %s41
      %s69 = sphi 0, %s71
      %s72 = sphi 0, %s69
      %s73 = sphi 0, %s72
      %s89 = sphi 0, %s73
      %s93 = sphi 0, %s93
      %s95 = sphi 0, %s93
      %s96 = sphi 0, %s95
      %s110 = sphi 0, %s96
      %s114 = sphi 0, %s114
      %s116 = sphi 0, %s114
      %s117 = sphi 0, %s116
      %s131 = sphi 0, %s117
      %s139 = sphi 0, %s141
      %s142 = sphi 0, %s139
      %s143 = sphi 0, %s142
      %s159 = sphi 0, %s143
    $region4: #{tpu_custom_call.1} parent=1 // loop_header_branch
      %16 = sbr.rel (%p14) target = $region8
    $region5: #{tpu_custom_call.1} parent=1 // loop_body
      %s18 = ssub.s32 %s13, 1
      %s19 = ssub.s32 %s13, 2
      %s26 = sadd.s32 1, %s21
      %p27 = scmp.ge.s32.totalorder %s26, 4
      %s28 = scalar_select %p27, 0, %s26
      %s29 = sadd.s32 1, %s20
      %s30 = scalar_select %p27, %s29, %s20
      %p31 = scmp.ge.s32.totalorder %s30, 2
      %s32 = scalar_select %p31, 0, %s30
      %s33 = ssub.s32 %s20, %s32
      %s34 = ssub.s32 %s21, %s28
      %s35 = sor.u32 %s33, %s34
      %p36 = scmp.eq.s32.totalorder %s35, 0
      %s38 = sadd.s32 %s37, 1
      %s39 = scalar_select %p36, %s37, %s38
      %p42 = pneg %p36
      %p43 = scmp.eq.s32.totalorder %s13, 7
      %p44 = por %p42, %p43
      %p45 = scmp.ne.s32.totalorder %s37, %s40
      %p46 = scmp.eq.s32.totalorder %s13, 0
      %p47 = por %p45, %p46
      %p48 = scmp.ne.s32.totalorder %s37, %s40
      %p49 = scmp.eq.s32.totalorder %s18, 7
      %p50 = por %p48, %p49
      %p51 = scmp.ne.s32.totalorder %s40, %s41
      %p52 = scmp.eq.s32.totalorder %s18, 0
      %p53 = por %p51, %p52
      %p54 = scmp.ne.s32.totalorder %s40, %s41
      %p55 = scmp.eq.s32.totalorder %s19, 7
      %p56 = por %p54, %p55
      %p58 = scmp.ne.s32.totalorder %s41, %s57
      %p59 = scmp.eq.s32.totalorder %s19, 0
      %p60 = por %p58, %p59
      %s61 = sadd.s32 %s21, 1
      %s62 = smul.u32 %s61, 2
      %s63 = sadd.s32 %s28, 1
      %s64 = smul.u32 %s63, 2
      %s65 = ssub.s32 %s20, %s32
      %s66 = ssub.s32 %s62, %s64
      %s67 = sor.u32 %s65, %s66
      %p68 = scmp.eq.s32.totalorder %s67, 0
      %s70 = sadd.s32 %s69, 1
      %s71 = scalar_select %p68, %s69, %s70
      %p74 = pneg %p68
      %p75 = scmp.eq.s32.totalorder %s13, 7
      %p76 = por %p74, %p75
      %p77 = scmp.ne.s32.totalorder %s69, %s72
      %p78 = scmp.eq.s32.totalorder %s13, 0
      %p79 = por %p77, %p78
      %p80 = scmp.ne.s32.totalorder %s69, %s72
      %p81 = scmp.eq.s32.totalorder %s18, 7
      %p82 = por %p80, %p81
      %p83 = scmp.ne.s32.totalorder %s72, %s73
      %p84 = scmp.eq.s32.totalorder %s18, 0
      %p85 = por %p83, %p84
      %p86 = scmp.ne.s32.totalorder %s72, %s73
      %p87 = scmp.eq.s32.totalorder %s19, 7
      %p88 = por %p86, %p87
      %p90 = scmp.ne.s32.totalorder %s73, %s89
      %p91 = scmp.eq.s32.totalorder %s19, 0
      %p92 = por %p90, %p91
      %s94 = sadd.s32 %s93, 1
      %p97 = scmp.eq.s32.totalorder %s13, 7
      %p98 = scmp.ne.s32.totalorder %s93, %s95
      %p99 = scmp.eq.s32.totalorder %s13, 0
      %p100 = por %p98, %p99
      %p101 = scmp.ne.s32.totalorder %s93, %s95
      %p102 = scmp.eq.s32.totalorder %s18, 7
      %p103 = por %p101, %p102
      %p104 = scmp.ne.s32.totalorder %s95, %s96
      %p105 = scmp.eq.s32.totalorder %s18, 0
      %p106 = por %p104, %p105
      %p107 = scmp.ne.s32.totalorder %s95, %s96
      %p108 = scmp.eq.s32.totalorder %s19, 7
      %p109 = por %p107, %p108
      %p111 = scmp.ne.s32.totalorder %s96, %s110
      %p112 = scmp.eq.s32.totalorder %s19, 0
      %p113 = por %p111, %p112
      %s115 = sadd.s32 %s114, 1
      %p118 = scmp.eq.s32.totalorder %s13, 7
      %p119 = scmp.ne.s32.totalorder %s114, %s116
      %p120 = scmp.eq.s32.totalorder %s13, 0
      %p121 = por %p119, %p120
      %p122 = scmp.ne.s32.totalorder %s114, %s116
      %p123 = scmp.eq.s32.totalorder %s18, 7
      %p124 = por %p122, %p123
      %p125 = scmp.ne.s32.totalorder %s116, %s117
      %p126 = scmp.eq.s32.totalorder %s18, 0
      %p127 = por %p125, %p126
      %p128 = scmp.ne.s32.totalorder %s116, %s117
      %p129 = scmp.eq.s32.totalorder %s19, 7
      %p130 = por %p128, %p129
      %p132 = scmp.ne.s32.totalorder %s117, %s131
      %p133 = scmp.eq.s32.totalorder %s19, 0
      %p134 = por %p132, %p133
      %s135 = ssub.s32 %s20, %s32
      %s136 = ssub.s32 %s21, %s28
      %s137 = sor.u32 %s135, %s136
      %p138 = scmp.eq.s32.totalorder %s137, 0
      %s140 = sadd.s32 %s139, 1
      %s141 = scalar_select %p138, %s139, %s140
      %p144 = pneg %p138
      %p145 = scmp.eq.s32.totalorder %s13, 7
      %p146 = por %p144, %p145
      %p147 = scmp.ne.s32.totalorder %s139, %s142
      %p148 = scmp.eq.s32.totalorder %s13, 0
      %p149 = por %p147, %p148
      %p150 = scmp.ne.s32.totalorder %s139, %s142
      %p151 = scmp.eq.s32.totalorder %s18, 7
      %p152 = por %p150, %p151
      %p153 = scmp.ne.s32.totalorder %s142, %s143
      %p154 = scmp.eq.s32.totalorder %s18, 0
      %p155 = por %p153, %p154
      %p156 = scmp.ne.s32.totalorder %s142, %s143
      %p157 = scmp.eq.s32.totalorder %s19, 7
      %p158 = por %p156, %p157
      %p160 = scmp.ne.s32.totalorder %s143, %s159
      %p161 = scmp.eq.s32.totalorder %s19, 0
      %p162 = por %p160, %p161
      %p163 = scmp.le.s32.totalorder 1, %s13
      %p164 = scmp.lt.s32.totalorder %s13, 9
      %p165 = pnand %p163, %p164
      %p166 = pneg %p165
      // Predicated region
      $region9: #{tpu_custom_call.1} parent=5 // pred_check
        _
      $region10: #{tpu_custom_call.1} parent=5 // pred_check_branch
        %168 = sbr.rel (%p165) target = $region12
      $region11: #{tpu_custom_call.1} parent=5 // pred_region
        %s169 = ssub.s32 %s13, 1
        // Predicated region
        $region13: #{tpu_custom_call.1} parent=11 // pred_check
          %p170 = pneg %p106
        $region14: #{tpu_custom_call.1} parent=11 // pred_check_branch
          %172 = sbr.rel (%p170) target = $region16
        $region15: #{tpu_custom_call.1} parent=11 // pred_region
          _
        $region16: #{tpu_custom_call.1} parent=11 // pred_fallthru
          _
        // Predicated region
        $region17: #{tpu_custom_call.1} parent=11 // pred_check
          %p173 = pneg %p127
        $region18: #{tpu_custom_call.1} parent=11 // pred_check_branch
          %175 = sbr.rel (%p173) target = $region20
        $region19: #{tpu_custom_call.1} parent=11 // pred_region
          _
        $region20: #{tpu_custom_call.1} parent=11 // pred_fallthru
          _
      $region12: #{tpu_custom_call.1} parent=5 // pred_fallthru
        _
      %p176 = scmp.lt.s32.totalorder %s13, 8
      // Predicated region
      $region21: #{tpu_custom_call.1} parent=5 // pred_check
        %p177 = pneg %p176
      $region22: #{tpu_custom_call.1} parent=5 // pred_check_branch
        %179 = sbr.rel (%p177) target = $region24
      $region23: #{tpu_custom_call.1} parent=5 // pred_region
        // Predicated region
        $region25: #{tpu_custom_call.1} parent=23 // pred_check
          %p180 = pneg %p47
        $region26: #{tpu_custom_call.1} parent=23 // pred_check_branch
          %182 = sbr.rel (%p180) target = $region28
        $region27: #{tpu_custom_call.1} parent=23 // pred_region
          %s183 = smul.u32 2, %s21
          %s184 = ssub.s32 9, %s183
          %p185 = scmp.lt.s32.totalorder %s184, 2
          %s186 = scalar_select %p185, %s184, 2
          %s187 = smul.u32 8, %s186
          %s188 = smul.u32 %s187, 2
          %p189 = scmp.lt.s32.totalorder %s20, 1
          %s190 = scalar_select %p189, %s20, 1
          %p191 = scmp.lt.s32.totalorder %s183, 8
          %s192 = scalar_select %p191, %s183, 8
          %s193 = smul.addr %s192, 2
          %s194 = smul.addr %s190, 18
          %s195 = sadd.s32 %s193, %s194
          %s196 = smul.addr %s195, 8
          %s197 = scalar_lea.vmem %s0, %s196
          %s198 = smul.u32 2, %s21
          %s199 = ssub.s32 9, %s198
          %p200 = scmp.lt.s32.totalorder %s199, 2
          %s201 = scalar_select %p200, %s199, 2
          %s202 = smul.u32 8, %s201
          %s203 = smul.u32 %s202, 2
        $region28: #{tpu_custom_call.1} parent=23 // pred_fallthru
          _
        // Predicated region
        $region29: #{tpu_custom_call.1} parent=23 // pred_check
          %p204 = pneg %p79
        $region30: #{tpu_custom_call.1} parent=23 // pred_check_branch
          %206 = sbr.rel (%p204) target = $region32
        $region31: #{tpu_custom_call.1} parent=23 // pred_region
          %s207 = sadd.s32 %s21, 1
          %s208 = smul.u32 %s207, 2
          %p209 = scmp.lt.s32.totalorder %s20, 1
          %s210 = scalar_select %p209, %s20, 1
          %p211 = scmp.lt.s32.totalorder %s208, 8
          %s212 = scalar_select %p211, %s208, 8
          %s213 = smul.addr %s212, 2
          %s214 = smul.addr %s210, 18
          %s215 = sadd.s32 %s213, %s214
          %s216 = smul.addr %s215, 8
          %s217 = scalar_lea.vmem %s1, %s216
          %s218 = sadd.s32 %s21, 1
          %s219 = smul.u32 %s218, 2
        $region32: #{tpu_custom_call.1} parent=23 // pred_fallthru
          _
      $region24: #{tpu_custom_call.1} parent=5 // pred_fallthru
        _
      %p220 = scmp.le.s32.totalorder 1, %s13
      %p221 = scmp.lt.s32.totalorder %s13, 9
      %p222 = pnand %p220, %p221
      %p223 = pneg %p222
      // Predicated region
      $region33: #{tpu_custom_call.1} parent=5 // pred_check
        _
      $region34: #{tpu_custom_call.1} parent=5 // pred_check_branch
        %225 = sbr.rel (%p222) target = $region36
      $region35: #{tpu_custom_call.1} parent=5 // pred_region
        %s226 = ssub.s32 %s13, 1
        %s227 = smul.u32 2, %s23
        %s228 = ssub.s32 9, %s227
        %p229 = scmp.lt.s32.totalorder %s228, 2
        %s230 = scalar_select %p229, %s228, 2
        %s231 = smul.u32 8, %s230
        %s232 = smul.u32 %s231, 2
        %p233 = scmp.lt.s32.totalorder %s22, 1
        %s234 = scalar_select %p233, %s22, 1
        %p235 = scmp.lt.s32.totalorder %s227, 8
        %s236 = scalar_select %p235, %s227, 8
        %s237 = smul.addr %s236, 2
        %s238 = smul.addr %s234, 18
        %s239 = sadd.s32 %s237, %s238
        %s240 = smul.addr %s239, 8
        %s241 = scalar_lea.vmem %s0, %s240
        %p242 = pneg %p53
        %p243 = pneg %p50
        %s244 = sadd.s32 %s23, 1
        %s245 = smul.u32 %s244, 2
        %p246 = scmp.lt.s32.totalorder %s22, 1
        %s247 = scalar_select %p246, %s22, 1
        %p248 = scmp.lt.s32.totalorder %s245, 8
        %s249 = scalar_select %p248, %s245, 8
        %s250 = smul.addr %s249, 2
        %s251 = smul.addr %s247, 18
        %s252 = sadd.s32 %s250, %s251
        %s253 = smul.addr %s252, 8
        %s254 = scalar_lea.vmem %s1, %s253
        %p255 = pneg %p85
        %p256 = pneg %p82
        %p257 = pneg %p106
        %p258 = pneg %p103
        %p259 = pneg %p127
        %p260 = pneg %p124
        %p261 = pneg %p155
        %p262 = pneg %p152
        %s263 = sand.u32 %s142, 1
        %s264 = scalar_lea.sflag [#allocation3], %s263
        %s265 = sand.u32 %s142, 1
        %s266 = smul.addr %s265, 16
        %s267 = scalar_lea.vmem [#allocation2], %s266
        %s268 = smul.u32 2, %s23
        %s269 = ssub.s32 9, %s268
        %p270 = scmp.lt.s32.totalorder %s269, 2
        %s271 = scalar_select %p270, %s269, 2
        %s272 = smul.u32 8, %s271
        %s273 = smul.u32 %s272, 2
        %p274 = scmp.lt.s32.totalorder %s22, 1
        %s275 = scalar_select %p274, %s22, 1
        %p276 = scmp.lt.s32.totalorder %s268, 8
        %s277 = scalar_select %p276, %s268, 8
        %s278 = smul.addr %s277, 2
        %s279 = smul.addr %s275, 18
        %s280 = sadd.s32 %s278, %s279
        %s281 = smul.addr %s280, 8
        %s282 = scalar_lea.vmem %s0, %s281
        %s283 = smul.u32 2, %s23
        %s284 = ssub.s32 9, %s283
        %p285 = scmp.lt.s32.totalorder %s284, 2
        %s286 = scalar_select %p285, %s284, 2
        %s287 = smul.u32 8, %s286
        %s288 = smul.u32 %s287, 2
        %s289 = sadd.s32 %s23, 1
        %s290 = smul.u32 %s289, 2
        %p291 = scmp.lt.s32.totalorder %s22, 1
        %s292 = scalar_select %p291, %s22, 1
        %p293 = scmp.lt.s32.totalorder %s290, 8
        %s294 = scalar_select %p293, %s290, 8
        %s295 = smul.addr %s294, 2
        %s296 = smul.addr %s292, 18
        %s297 = sadd.s32 %s295, %s296
        %s298 = smul.addr %s297, 8
        %s299 = scalar_lea.vmem %s1, %s298
        %s300 = sadd.s32 %s23, 1
        %s301 = smul.u32 %s300, 2
        %s302 = smul.u32 2, %s23
        %v303 = vld [vmem:[%s282] sm:$0xff]
        %v304 = vld [vmem:[%s282 + $0x8] sm:$0x1]
        %v305 = vld [vmem:[%s282 + $0x10] sm:$0xff]
        %v306 = vld [vmem:[%s282 + $0x18] sm:$0x1]
        %v307 = vld [vmem:[%s299] sm:$0xff]
        %v308 = vld [vmem:[%s299 + $0x8] sm:$0x1]
        %v309 = vld [vmem:[%s2] sm:$0xff]
        %v310 = vld [vmem:[%s2 + $0x8] sm:$0xff]
        %vm315 = vcmask 1046528
        %v316 = vrot.slane %v303, 1
        %v317 = vrot.slane %v304, 1
        %v318 = vsel %vm315, %v316, %v317
        %v319 = vrot.slane %v305, 1
        %v320 = vrot.slane %v306, 1
        %v321 = vsel %vm315, %v319, %v320
        %s322 = scalar_lea.vmem %s2, 16
        %v323 = vld [vmem:[%s322] sm:$0xff]
        %v324 = vld [vmem:[%s322 + $0x8] sm:$0xff]
        %vm325 = vcmask 130048
        %v326 = vsel %vm325, %v318, 0
        %v328 = vsel %vm325, %v321, 0
        %330 = vmatpush.msra.mxu0 0.0
        %331 = vmatpush.msra.mxu0 0.0
        %332 = vmatpush.msra.mxu0 0.0
        %333 = vmatpush.msra.mxu0 0.0
        %334 = vmatpush.msra.mxu0 0.0
        %335 = vmatpush.msra.mxu0 0.0
        %336 = vmatpush.msra.mxu0 0.0
        %337 = vmatpush.msra.mxu0 0.0
        %338 = vmatpush.msra.mxu0 0.0
        %339 = vmatpush.msra.mxu0 0.0
        %340 = vmatpush.msra.mxu0 0.0
        %341 = vmatpush.msra.mxu0 0.0
        %342 = vmatpush.msra.mxu0 0.0
        %343 = vmatpush.msra.mxu0 0.0
        %344 = vmatpush.msra.mxu0 %v324
        %345 = vmatpush.msra.mxu0 %v323
        %346 = vmatmul.f32.gmra.mxu0 %v326
        %v347 = vpop.f32.mrf.mxu0
        %v348 = vadd.f32 0.0, %v347
        %349 = vmatmul.f32.gmra.mxu0 %v328
        %v350 = vpop.f32.mrf.mxu0
        %v351 = vadd.f32 0.0, %v350
        %352 = vdwg.mxu0
        %v353 = vsel %vm325, %v303, 0
        %v355 = vsel %vm325, %v305, 0
        %357 = vmatpush.msra.mxu0 0.0
        %358 = vmatpush.msra.mxu0 0.0
        %359 = vmatpush.msra.mxu0 0.0
        %360 = vmatpush.msra.mxu0 0.0
        %361 = vmatpush.msra.mxu0 0.0
        %362 = vmatpush.msra.mxu0 0.0
        %363 = vmatpush.msra.mxu0 0.0
        %364 = vmatpush.msra.mxu0 0.0
        %365 = vmatpush.msra.mxu0 0.0
        %366 = vmatpush.msra.mxu0 0.0
        %367 = vmatpush.msra.mxu0 0.0
        %368 = vmatpush.msra.mxu0 0.0
        %369 = vmatpush.msra.mxu0 0.0
        %370 = vmatpush.msra.mxu0 0.0
        %371 = vmatpush.msra.mxu0 %v310
        %372 = vmatpush.msra.mxu0 %v309
        %373 = vmatmul.f32.gmra.mxu0 %v353
        %v374 = vpop.f32.mrf.mxu0
        %v375 = vadd.f32 %v348, %v374
        %376 = vmatmul.f32.gmra.mxu0 %v355
        %v377 = vpop.f32.mrf.mxu0
        %v378 = vadd.f32 %v351, %v377
        %379 = vdwg.mxu0
        %s380 = scalar_lea.vmem %s2, 32
        %v381 = vld [vmem:[%s380] sm:$0xff]
        %v382 = vld [vmem:[%s380 + $0x8] sm:$0xff]
        %v384 = vsel %vm325, %v307, 0
        %386 = vmatpush.msra.mxu0 0.0
        %387 = vmatpush.msra.mxu0 0.0
        %388 = vmatpush.msra.mxu0 0.0
        %389 = vmatpush.msra.mxu0 0.0
        %390 = vmatpush.msra.mxu0 0.0
        %391 = vmatpush.msra.mxu0 0.0
        %392 = vmatpush.msra.mxu0 0.0
        %393 = vmatpush.msra.mxu0 0.0
        %394 = vmatpush.msra.mxu0 0.0
        %395 = vmatpush.msra.mxu0 0.0
        %396 = vmatpush.msra.mxu0 0.0
        %397 = vmatpush.msra.mxu0 0.0
        %398 = vmatpush.msra.mxu0 0.0
        %399 = vmatpush.msra.mxu0 0.0
        %400 = vmatpush.msra.mxu0 %v382
        %401 = vmatpush.msra.mxu0 %v381
        %402 = vmatmul.f32.gmra.mxu0 %v355
        %v403 = vpop.f32.mrf.mxu0
        %v404 = vadd.f32 0.0, %v403
        %405 = vmatmul.f32.gmra.mxu0 %v384
        %v406 = vpop.f32.mrf.mxu0
        %v407 = vadd.f32 0.0, %v406
        %408 = vdwg.mxu0
        %v409 = vadd.f32 %v375, %v404
        %v410 = vadd.f32 %v378, %v407
        %v412 = vrot.slane %v307, 1
        %v413 = vrot.slane %v308, 1
        %v414 = vsel %vm315, %v412, %v413
        %s415 = scalar_lea.vmem %s2, 48
        %v416 = vld [vmem:[%s415] sm:$0xff]
        %v417 = vld [vmem:[%s415 + $0x8] sm:$0xff]
        %v418 = vsel %vm325, %v414, 0
        %420 = vmatpush.msra.mxu0 0.0
        %421 = vmatpush.msra.mxu0 0.0
        %422 = vmatpush.msra.mxu0 0.0
        %423 = vmatpush.msra.mxu0 0.0
        %424 = vmatpush.msra.mxu0 0.0
        %425 = vmatpush.msra.mxu0 0.0
        %426 = vmatpush.msra.mxu0 0.0
        %427 = vmatpush.msra.mxu0 0.0
        %428 = vmatpush.msra.mxu0 0.0
        %429 = vmatpush.msra.mxu0 0.0
        %430 = vmatpush.msra.mxu0 0.0
        %431 = vmatpush.msra.mxu0 0.0
        %432 = vmatpush.msra.mxu0 0.0
        %433 = vmatpush.msra.mxu0 0.0
        %434 = vmatpush.msra.mxu0 %v417
        %435 = vmatpush.msra.mxu0 %v416
        %436 = vmatmul.f32.gmra.mxu0 %v328
        %v437 = vpop.f32.mrf.mxu0
        %v438 = vadd.f32 0.0, %v437
        %439 = vmatmul.f32.gmra.mxu0 %v418
        %v440 = vpop.f32.mrf.mxu0
        %v441 = vadd.f32 0.0, %v440
        %442 = vdwg.mxu0
        %v443 = vadd.f32 %v409, %v438
        %v444 = vadd.f32 %v410, %v441
        %v445 = vld [vmem:[%s3] sm:$0x1]
        %v447 = vperm.slane %v445, 0
        %v449 = vadd.f32 %v443, %v447
        %v450 = vadd.f32 %v444, %v447
        %v451 = vxor.u32 %v449, 2147483648
        %v452 = vxor.u32 %v450, 2147483648
        %v453 = vmul.f32 %v451, 1.442695
        %v454 = vpow.pop %v453
        %v455 = vmul.f32 %v452, 1.442695
        %v456 = vpow.pop %v455
        %v457 = vadd.f32 %v454, 1.0
        %v458 = vadd.f32 %v456, 1.0
        %v459 = vrcp.pop %v457
        %v460 = vmul.f32 %v457, %v459
        %v461 = vsub.f32 1.0, %v460
        %v462 = vmul.f32 %v459, %v461
        %v463 = vadd.f32 %v459, %v462
        %vm464 = vweird.f32 %v457
        %vm465 = vweird.f32 %v459
        %vm466 = vmor %vm464, %vm465
        %v467 = vsel %vm466, %v459, %v463
        %v468 = vand.u32 2147483647, %v457
        %vm469 = vcmp.eq.f32.partialorder %v468, 8.507059e+37
        %v470 = vand.u32 %v457, 2147483648
        %v471 = vor.u32 1.1754944e-38, %v470
        %v472 = vsel %vm469, %v471, %v467
        %v473 = vmul.f32 1.0, %v472
        %v474 = vrcp.pop %v458
        %v475 = vmul.f32 %v458, %v474
        %v476 = vsub.f32 1.0, %v475
        %v477 = vmul.f32 %v474, %v476
        %v478 = vadd.f32 %v474, %v477
        %vm479 = vweird.f32 %v458
        %vm480 = vweird.f32 %v474
        %vm481 = vmor %vm479, %vm480
        %v482 = vsel %vm481, %v474, %v478
        %v483 = vand.u32 2147483647, %v458
        %vm484 = vcmp.eq.f32.partialorder %v483, 8.507059e+37
        %v485 = vand.u32 %v458, 2147483648
        %v486 = vor.u32 1.1754944e-38, %v485
        %v487 = vsel %vm484, %v486, %v482
        %v488 = vmul.f32 1.0, %v487
        %v489 = vmul.f32 %v449, %v473
        %v490 = vmul.f32 %v450, %v488
        %491 = vst [vmem:[%s267] sm:$0xff] %v489
        %492 = vst [vmem:[%s267 + $0x8] sm:$0xff] %v490
        %s493 = sand.u32 %s142, 1
        %s494 = scalar_lea.sflag [#allocation3], %s493
        %s495 = sand.u32 %s142, 1
        %s496 = smul.addr %s495, 16
        %s497 = scalar_lea.vmem [#allocation2], %s496
        // Predicated region
        $region37: #{tpu_custom_call.1} parent=35 // pred_check
          %p498 = pneg %p152
        $region38: #{tpu_custom_call.1} parent=35 // pred_check_branch
          %500 = sbr.rel (%p498) target = $region40
        $region39: #{tpu_custom_call.1} parent=35 // pred_region
          %s501 = smul.u32 2, %s23
          %503 = vsyncadd %s494, 0
          %s504 = smul.addr %s22, 8
          %s505 = sadd.s32 %s501, %s504
          %s506 = smul.addr %s505, 8
          %s507 = scalar_lea.hbm %s4, %s506
          %s508 = sshll.u32 %s497, 4
          %s509 = int_to_ptr.vmem [resolvable:$true] %s508
          %s510 = sshll.u32 %s507, 4
          %s511 = int_to_ptr.hbm [resolvable:$true] %s510
          %516 = dma.vmem_to_hbm [thread:$0]  %s509, 256, %s511, %s494, 128, 128, 8
        $region40: #{tpu_custom_call.1} parent=35 // pred_fallthru
          _
      $region36: #{tpu_custom_call.1} parent=5 // pred_fallthru
        _
      %p517 = scmp.le.s32.totalorder 2, %s13
      // Predicated region
      $region41: #{tpu_custom_call.1} parent=5 // pred_check
        %p518 = pneg %p517
      $region42: #{tpu_custom_call.1} parent=5 // pred_check_branch
        %520 = sbr.rel (%p518) target = $region44
      $region43: #{tpu_custom_call.1} parent=5 // pred_region
        %s521 = ssub.s32 %s13, 2
        // Predicated region
        $region45: #{tpu_custom_call.1} parent=43 // pred_check
          %p522 = pneg %p158
        $region46: #{tpu_custom_call.1} parent=43 // pred_check_branch
          %524 = sbr.rel (%p522) target = $region48
        $region47: #{tpu_custom_call.1} parent=43 // pred_region
          %s525 = sand.u32 %s143, 1
          %s526 = scalar_lea.sflag [#allocation3], %s525
          %s527 = sand.u32 %s143, 1
          %s528 = smul.addr %s527, 16
          %s529 = scalar_lea.vmem [#allocation2], %s528
          %531 = dma.done %s526, 256
        $region48: #{tpu_custom_call.1} parent=43 // pred_fallthru
          _
      $region44: #{tpu_custom_call.1} parent=5 // pred_fallthru
        _
    $region6: #{tpu_custom_call.1} parent=1 // loop_footer
      %s17 = sadd.s32 1, %s13
    $region7: #{tpu_custom_call.1} parent=1 // loop_footer_branch
      %12 = sbr.rel target = $region3
    $region8: #{tpu_custom_call.1} parent=1 // loop_exit
      _
    %532 = vsyncpa [#allocation3], 1
    %s533 = scalar_lea.sflag [#allocation3], 1
    %534 = vsyncpa %s533, 1

</llo_original>
